<compile_context>
chip_gen: v6e
topology: v6e:2x2x1
jax: 0.10.0
libtpu: 0.0.40
codegen_flags: <defaults>
</compile_context>

<pallas_src>
import functools

import jax
import jax.numpy as jnp
from jax.experimental import pallas as pl
from jax.experimental.pallas import tpu as pltpu

EPS = 1e-5
MATMUL_DTYPE = jnp.bfloat16      # weights stored / matmul operands in bf16, f32 accumulation


# ---------------------------------------------------------------------------
# In-kernel building blocks
# ---------------------------------------------------------------------------
def _mm(x, w):
    return jnp.dot(x.astype(MATMUL_DTYPE), w.astype(MATMUL_DTYPE),
                   preferred_element_type=jnp.float32)


def _bn(y):
    # NOTE: only valid because the kernel sees the FULL batch (grid=(1,)).
    mean = jnp.mean(y, axis=0, keepdims=True)
    var = jnp.mean((y - mean) ** 2, axis=0, keepdims=True)
    return (y - mean) * jax.lax.rsqrt(var + EPS)


# ---------------------------------------------------------------------------
# Standalone WeightedMean kernel (the spec module): separate VMEM view inputs,
# no in-kernel stack, softmax-normalized weights read as SMEM scalars.
# ---------------------------------------------------------------------------
def _weighted_mean_kernel(w_ref, *rest):
    z_refs, o_ref = rest[:-1], rest[-1]
    acc = w_ref[0] * z_refs[0][...]
    for v in range(1, len(z_refs)):
        acc = acc + w_ref[v] * z_refs[v][...]
    o_ref[...] = acc


def weighted_mean(inputs, weights):
    """Pallas equivalent of WeightedMean.forward (softmax-normalized weighted sum)."""
    w_norm = jax.nn.softmax(weights.astype(jnp.float32))   # length-V glue
    n, f = inputs[0].shape
    v = len(inputs)
    return pl.pallas_call(
        _weighted_mean_kernel,
        out_shape=jax.ShapeDtypeStruct((n, f), jnp.float32),
        grid=(1,),
        in_specs=[pl.BlockSpec(memory_space=pltpu.MemorySpace.SMEM)]
                 + [pl.BlockSpec((n, f), lambda i: (0, 0)) for _ in range(v)],
        out_specs=pl.BlockSpec((n, f), lambda i: (0, 0)),
    )(w_norm, *inputs)


# ---------------------------------------------------------------------------
# Fully fused DE_MCC forward kernel (one pallas_call, packed weight slabs)
# ---------------------------------------------------------------------------
def _de_mcc_kernel(*refs, view_old, view_new, feat, cls, consumers):
    it = iter(refs)
    fw_old = next(it)                       # SMEM (view_old,) softmaxed fusion weights
    fw_new = next(it)                       # SMEM (view_new,)
    xs = [next(it) for _ in range(view_new)]
    w1, b1 = [], []
    for _ in range(view_new):               # per-view concatenated layer-1 weights/biases
        w1.append(next(it)); b1.append(next(it))
    w2, b2, w3, b3 = (next(it) for _ in range(4))           # stacked (E, ...) slabs
    ddc_hw, ddc_hb, ddc_ow, ddc_ob = (next(it) for _ in range(4))  # stacked (3, ...) slabs
    gate_w, gate_b = next(it), next(it)
    zs_ref, cls_ref = next(it), next(it)    # lane-packed output slabs

    n_enc = view_old + view_new + 1
    hdim = w2.shape[1]                      # 512

    # ---- layer 1: ONE matmul per input view feeds every encoder on that view ----
    h1 = [None] * n_enc
    for v in range(view_new):
        cat = jnp.maximum(_mm(xs[v][...], w1[v][...]) + b1[v][...], 0.0)
        for j, e in enumerate(consumers[v]):
            h1[e] = cat[:, j * hdim:(j + 1) * hdim]

    # ---- layers 2 & 3 per encoder; weights sliced from the stacked slabs ----
    z = [None] * n_enc
    for e in range(n_enc):
        h2 = jnp.maximum(_mm(h1[e], w2[e]) + b2[e], 0.0)
        z[e] = jnp.maximum(_mm(h2, w3[e]) + b3[e], 0.0)

    # ---- lane-packed zs slab: [old views | new views] ----
    for e in range(view_old + view_new):
        zs_ref[:, e * feat:(e + 1) * feat] = z[e]

    # ---- WeightedMean fusions (inline, no stack) ----
    fused_old = fw_old[0] * z[0]
    for v in range(1, view_old):
        fused_old = fused_old + fw_old[v] * z[v]
    fused_new = fw_new[0] * z[view_old]
    for v in range(1, view_new):
        fused_new = fused_new + fw_new[v] * z[view_old + v]

    # ---- DDC heads (slab index: 0=old, 1=new, 2=single) ----
    def ddc(x, i):
        h = _bn(jnp.maximum(_mm(x, ddc_hw[i]) + ddc_hb[i], 0.0))
        return _bn(_mm(h, ddc_ow[i]) + ddc_ob[i])

    fused_old_o = ddc(fused_old, 0)
    fused_new_o = ddc(fused_new, 1)
    single_o = ddc(z[n_enc - 1], 2)

    # ---- class slab: [fused_new | fused_old | single | gate softmax] ----
    cls_ref[:, 0:cls] = fused_new_o
    cls_ref[:, cls:2 * cls] = fused_old_o
    cls_ref[:, 2 * cls:3 * cls] = single_o

    # read back == concat(fuse); gate is ONE (n,3*cls)@(3*cls,cls) matmul
    hidden = cls_ref[:, 0:3 * cls]
    logits = _mm(hidden, gate_w[...]) + gate_b[...]
    m = jnp.max(logits, axis=1, keepdims=True)
    e_ = jnp.exp(logits - m)
    # exact normalization (approx reciprocal previously broke the sum-to-1 check)
    cls_ref[:, 3 * cls:4 * cls] = e_ / jnp.sum(e_, axis=1, keepdims=True)


# ---------------------------------------------------------------------------
# One-time parameter packing: bf16 weights + slab layout (done OUTSIDE the fwd)
# ---------------------------------------------------------------------------
def pack_params(params):
    view_old = len(params["old_model"]["encoders"])
    view_new = len(params["new_model"]["encoders"])
    enc = ([params["old_model"]["encoders"][v] for v in range(view_old)]
           + [params["new_model"]["encoders"][v] for v in range(view_new)]
           + [params["single"]["encoder"]])
    # encoder ids consuming each input view (old_v, new_v, and single on the last view)
    consumers = []
    for v in range(view_new):
        ids = ([v] if v < view_old else []) + [view_old + v]
        if v == view_new - 1:
            ids.append(view_old + view_new)
        consumers.append(tuple(ids))

    bf16 = lambda a: a.astype(MATMUL_DTYPE)
    arrays = {
        "fusion_w_old": params["old_model"]["fusion_w"],
        "fusion_w_new": params["new_model"]["fusion_w"],
        "w1cat": [bf16(jnp.concatenate([enc[e]["l1"]["w"] for e in consumers[v]], axis=1))
                  for v in range(view_new)],
        "b1cat": [jnp.concatenate([enc[e]["l1"]["b"] for e in consumers[v]], axis=1)
                  for v in range(view_new)],
        "w2": bf16(jnp.stack([e_["l2"]["w"] for e_ in enc])),
        "b2": jnp.stack([e_["l2"]["b"] for e_ in enc]),
        "w3": bf16(jnp.stack([e_["l3"]["w"] for e_ in enc])),
        "b3": jnp.stack([e_["l3"]["b"] for e_ in enc]),
    }
    ddc = [params["old_model"]["ddc"], params["new_model"]["ddc"], params["single"]["ddc"]]
    arrays.update({
        "ddc_hw": bf16(jnp.stack([d["hidden"]["w"] for d in ddc])),
        "ddc_hb": jnp.stack([d["hidden"]["b"] for d in ddc]),
        "ddc_ow": bf16(jnp.stack([d["output"]["w"] for d in ddc])),
        "ddc_ob": jnp.stack([d["output"]["b"] for d in ddc]),
        "gate_w": bf16(params["gate"]["w"]),
        "gate_b": params["gate"]["b"],
    })
    meta = {
        "view_old": view_old, "view_new": view_new,
        "feat": enc[0]["l3"]["w"].shape[1],
        "cls": params["gate"]["w"].shape[1],
        "consumers": tuple(consumers),
    }
    return arrays, meta


def _full_spec(x):
    nd = len(x.shape)
    return pl.BlockSpec(x.shape, lambda i, _nd=nd: (0,) * _nd)


def de_mcc_fwd(packed, xs, *, meta):
    """Full DE_MCC.forward as ONE fused pallas_call (outputs sliced from two slabs)."""
    view_old, view_new = meta["view_old"], meta["view_new"]
    feat, cls, consumers = meta["feat"], meta["cls"], meta["consumers"]
    n = xs[0].shape[0]
    n_z = view_old + view_new

    fw_old = jax.nn.softmax(packed["fusion_w_old"].astype(jnp.float32))   # tiny glue
    fw_new = jax.nn.softmax(packed["fusion_w_new"].astype(jnp.float32))

    inputs = [fw_old, fw_new] + list(xs)
    for v in range(view_new):
        inputs += [packed["w1cat"][v], packed["b1cat"][v]]
    inputs += [packed["w2"], packed["b2"], packed["w3"], packed["b3"],
               packed["ddc_hw"], packed["ddc_hb"], packed["ddc_ow"], packed["ddc_ob"],
               packed["gate_w"], packed["gate_b"]]

    smem = pl.BlockSpec(memory_space=pltpu.MemorySpace.SMEM)
    in_specs = [smem, smem] + [_full_spec(a) for a in inputs[2:]]

    out_shapes = [jax.ShapeDtypeStruct((n, n_z * feat), jnp.float32),
                  jax.ShapeDtypeStruct((n, 4 * cls), jnp.float32)]
    out_specs = [_full_spec(s) for s in out_shapes]

    zs_slab, cls_slab = pl.pallas_call(
        functools.partial(_de_mcc_kernel, view_old=view_old, view_new=view_new,
                          feat=feat, cls=cls, consumers=consumers),
        out_shape=out_shapes,
        grid=(1,),
        in_specs=in_specs,
        out_specs=out_specs,
        compiler_params=pltpu.CompilerParams(
            dimension_semantics=("arbitrary",),
            vmem_limit_bytes=32 * 1024 * 1024,   # ~3.5 MiB bf16 weights fits everywhere
        ),
    )(*inputs)

    zs = [zs_slab[:, e * feat:(e + 1) * feat] for e in range(n_z)]
    zs_old, zs_new = zs[:view_old], zs[view_old:]
    fused_new = cls_slab[:, 0:cls]
    fused_old = cls_slab[:, cls:2 * cls]
    single = cls_slab[:, 2 * cls:3 * cls]
    output = cls_slab[:, 3 * cls:4 * cls]
    hidden = cls_slab[:, 0:3 * cls]          # free slice, no concat
    return zs_old, zs_new, output, hidden, [fused_new, fused_old, single]


# ---------------------------------------------------------------------------
# Deterministic parameter initialization (He normal weights, PyTorch-ish biases)
# ---------------------------------------------------------------------------
def init_linear(key, in_dim, out_dim):
    kw, kb = jax.random.split(key)
    w = jax.random.normal(kw, (in_dim, out_dim), jnp.float32) * jnp.sqrt(2.0 / in_dim)
    bound = 1.0 / jnp.sqrt(jnp.float32(in_dim))
    b = jax.random.uniform(kb, (1, out_dim), jnp.float32, -bound, bound)
    return {"w": w, "b": b}


def init_encoder(key, in_dim, feature_dim):
    k1, k2, k3 = jax.random.split(key, 3)
    return {"l1": init_linear(k1, in_dim, 512),
            "l2": init_linear(k2, 512, 512),
            "l3": init_linear(k3, 512, feature_dim)}


def init_ddc2(key, feature_dim, n_clusters):
    k1, k2 = jax.random.split(key)
    return {"hidden": init_linear(k1, feature_dim, 100),
            "output": init_linear(k2, 100, n_clusters)}   # BN affine = identity


def init_simvc(key, view, input_size, feature_dim, class_num):
    keys = jax.random.split(key, view + 1)
    return {"encoders": [init_encoder(keys[v], input_size[v], feature_dim) for v in range(view)],
            "fusion_w": jnp.full((view,), 1.0 / view, jnp.float32),
            "ddc": init_ddc2(keys[view], feature_dim, class_num)}


def init_basemvc(key, in_dim, feature_dim, class_num):
    k1, k2 = jax.random.split(key)
    return {"encoder": init_encoder(k1, in_dim, feature_dim),
            "ddc": init_ddc2(k2, feature_dim, class_num)}


def init_de_mcc(key, view_old, view_new, input_size, feature_dim, class_num):
    k_old, k_new, k_single, k_gate = jax.random.split(key, 4)
    return {
        "old_model": init_simvc(k_old, view_old, input_size, feature_dim, class_num),
        "new_model": init_simvc(k_new, view_new, input_size, feature_dim, class_num),
        "single": init_basemvc(k_single, input_size[view_new - 1], feature_dim, class_num),
        "gate": init_linear(k_gate, 3 * class_num, class_num),
        # TODO(synk): DE_MCC.__init__ builds self.cluster_module (DDC) but never uses it in
        # forward, so it is intentionally not instantiated here.
    }


# ---------------------------------------------------------------------------
# Pure-jnp reference (mirrors the bf16 weight/activation rounding of the kernel)
# ---------------------------------------------------------------------------
def _ref_mm(x, w):
    return jnp.dot(x.astype(MATMUL_DTYPE).astype(jnp.float32),
                   w.astype(MATMUL_DTYPE).astype(jnp.float32),
                   precision=jax.lax.Precision.HIGHEST)


def _ref_linear(x, p, relu=False, bn=False):
    y = _ref_mm(x, p["w"]) + p["b"]
    if relu:
        y = jnp.maximum(y, 0.0)
    if bn:
        mean = jnp.mean(y, axis=0, keepdims=True)
        var = jnp.mean((y - mean) ** 2, axis=0, keepdims=True)
        y = (y - mean) * jax.lax.rsqrt(var + EPS)
    return y


def _ref_encoder(p, x):
    h = _ref_linear(x, p["l1"], relu=True)
    h = _ref_linear(h, p["l2"], relu=True)
    return _ref_linear(h, p["l3"], relu=True)


def _ref_ddc(p, x):
    h = _ref_linear(x, p["hidden"], relu=True, bn=True)
    return _ref_linear(h, p["output"], bn=True)


def _ref_weighted_sum(tensors, weights):        # mirrors PyTorch _weighted_sum (f32 exact)
    w = jax.nn.softmax(weights)
    return jnp.sum(w[None, None, :] * jnp.stack(tensors, axis=-1), axis=-1)


def _ref_simvc(p, xs):
    zs = [_ref_encoder(p["encoders"][v], xs[v]) for v in range(len(p["encoders"]))]
    fused = _ref_weighted_sum(zs, p["fusion_w"])
    return zs, _ref_ddc(p["ddc"], fused)


def _ref_de_mcc(params, xs):
    zs_old, fused_old = _ref_simvc(params["old_model"], xs)
    zs_new, fused_new = _ref_simvc(params["new_model"], xs)
    single = _ref_ddc(params["single"]["ddc"],
                      _ref_encoder(params["single"]["encoder"], xs[-1]))
    fuse = [fused_new, fused_old, single]
    hidden = jnp.concatenate(fuse, axis=1)
    logits = _ref_mm(hidden, params["gate"]["w"]) + params["gate"]["b"]
    return zs_old, zs_new, jax.nn.softmax(logits, axis=1), hidden, fuse


# ---------------------------------------------------------------------------
if __name__ == "__main__":
    view_old, view_new = 2, 3
    input_size = [16, 20, 24]
    feature_dim = 32
    class_num = 4
    batch = 8

    key = jax.random.PRNGKey(0)
    k_params, k_data, k_wm = jax.random.split(key, 3)
    params = init_de_mcc(k_params, view_old, view_new, input_size, feature_dim, class_num)

    data_keys = jax.random.split(k_data, view_new)
    xs = [jax.random.normal(data_keys[v], (batch, input_size[v]), jnp.float32)
          for v in range(view_new)]

    # ---- standalone WeightedMean (the spec module) ----
    wm_keys = jax.random.split(k_wm, 3)
    views = [jax.random.normal(wm_keys[v], (batch, feature_dim), jnp.float32) for v in range(3)]
    wm_w = jnp.full((3,), 1.0 / 3.0, jnp.float32)
    wm_out = jax.block_until_ready(weighted_mean(views, wm_w))
    assert wm_out.shape == (batch, feature_dim)
    assert bool(jnp.allclose(wm_out, _ref_weighted_sum(views, wm_w), atol=1e-5))

    # ---- full DE_MCC forward: pack once, then one fused pallas_call per step ----
    packed, meta = pack_params(params)
    fwd = jax.jit(functools.partial(de_mcc_fwd, meta=meta))
    zs_old, zs_new, output, hidden, fuse = fwd(packed, xs)
    jax.block_until_ready(output)
    jax.block_until_ready(hidden)

    assert output.shape == (batch, class_num)
    assert hidden.shape == (batch, 3 * class_num)
    assert len(zs_old) == view_old and len(zs_new) == view_new
    assert bool(jnp.all(jnp.isfinite(output)))
    # exact normalization now -> rows sum to 1 to float rounding
    assert bool(jnp.allclose(jnp.sum(output, axis=1), 1.0, atol=1e-5))

    # numerics vs the bf16-mirrored pure-jnp reference of the same forward
    r_zs_old, r_zs_new, r_output, r_hidden, r_fuse = _ref_de_mcc(params, xs)
    for got, ref in zip(zs_old + zs_new + fuse + [hidden],
                        r_zs_old + r_zs_new + r_fuse + [r_hidden]):
        assert bool(jnp.allclose(got, ref, atol=5e-3)), "fused kernel mismatch"
    assert bool(jnp.allclose(output, r_output, atol=5e-3)), "gate softmax mismatch"

    print("KERNEL_OK")
</pallas_src>

<mosaic_0001>
module attributes {stable_mosaic.version = 11 : i64} {
  func.func @_weighted_mean_kernel(%arg0: i32, %arg1: memref<3xf32, #tpu.memory_space<smem>>, %arg2: memref<8x32xf32, #tpu.memory_space<vmem>>, %arg3: memref<8x32xf32, #tpu.memory_space<vmem>>, %arg4: memref<8x32xf32, #tpu.memory_space<vmem>>, %arg5: memref<8x32xf32, #tpu.memory_space<vmem>>) attributes {dimension_semantics = [#tpu.dimension_semantics<arbitrary>], iteration_bounds = array<i64: 1>, scalar_prefetch = 0 : i64, scratch_operands = 0 : i64, tpu.core_type = #tpu.core_type<tc>, window_params = [{transform_indices = @transform_0, window_bounds = array<i64: 3>}, {pipeline_mode = #tpu.pipeline_mode<synchronous>, transform_indices = @transform_1, window_bounds = array<i64: 8, 32>}, {pipeline_mode = #tpu.pipeline_mode<synchronous>, transform_indices = @transform_2, window_bounds = array<i64: 8, 32>}, {pipeline_mode = #tpu.pipeline_mode<synchronous>, transform_indices = @transform_3, window_bounds = array<i64: 8, 32>}, {pipeline_mode = #tpu.pipeline_mode<synchronous>, transform_indices = @transform_4, window_bounds = array<i64: 8, 32>}]} {
    %c0 = arith.constant 0 : index
    %0 = memref.load %arg1[%c0] : memref<3xf32, #tpu.memory_space<smem>>
    %c0_0 = arith.constant 0 : index
    %c0_1 = arith.constant 0 : index
    %1 = vector.load %arg2[%c0_0, %c0_1] : memref<8x32xf32, #tpu.memory_space<vmem>>, vector<8x32xf32>
    %2 = vector.broadcast %0 : f32 to vector<8x32xf32>
    %3 = arith.mulf %2, %1 : vector<8x32xf32>
    %c1 = arith.constant 1 : index
    %4 = memref.load %arg1[%c1] : memref<3xf32, #tpu.memory_space<smem>>
    %c0_2 = arith.constant 0 : index
    %c0_3 = arith.constant 0 : index
    %5 = vector.load %arg3[%c0_2, %c0_3] : memref<8x32xf32, #tpu.memory_space<vmem>>, vector<8x32xf32>
    %6 = vector.broadcast %4 : f32 to vector<8x32xf32>
    %7 = arith.mulf %6, %5 : vector<8x32xf32>
    %8 = arith.addf %3, %7 : vector<8x32xf32>
    %c2 = arith.constant 2 : index
    %9 = memref.load %arg1[%c2] : memref<3xf32, #tpu.memory_space<smem>>
    %c0_4 = arith.constant 0 : index
    %c0_5 = arith.constant 0 : index
    %10 = vector.load %arg4[%c0_4, %c0_5] : memref<8x32xf32, #tpu.memory_space<vmem>>, vector<8x32xf32>
    %11 = vector.broadcast %9 : f32 to vector<8x32xf32>
    %12 = arith.mulf %11, %10 : vector<8x32xf32>
    %13 = arith.addf %8, %12 : vector<8x32xf32>
    %c0_6 = arith.constant 0 : index
    %c0_7 = arith.constant 0 : index
    %14 = vector.load %arg5[%c0_6, %c0_7] : memref<8x32xf32, #tpu.memory_space<vmem>>, vector<8x32xf32>
    tpu.vector_store %arg5[%c0_6, %c0_7], %13 {strides = array<i32>} : memref<8x32xf32, #tpu.memory_space<vmem>>, vector<8x32xf32>,
    return
  }
  func.func @transform_0(%arg0: i32) -> i32 {
    %c0_i32 = arith.constant 0 : i32
    %c0_i32_0 = arith.constant 0 : i32
    return %c0_i32 : i32
  }
  func.func @transform_1(%arg0: i32) -> (i32, i32) {
    %c0_i32 = arith.constant 0 : i32
    %c0_i32_0 = arith.constant 0 : i32
    %c0_i32_1 = arith.constant 0 : i32
    return %c0_i32, %c0_i32_0 : i32, i32
  }
  func.func @transform_2(%arg0: i32) -> (i32, i32) {
    %c0_i32 = arith.constant 0 : i32
    %c0_i32_0 = arith.constant 0 : i32
    %c0_i32_1 = arith.constant 0 : i32
    return %c0_i32, %c0_i32_0 : i32, i32
  }
  func.func @transform_3(%arg0: i32) -> (i32, i32) {
    %c0_i32 = arith.constant 0 : i32
    %c0_i32_0 = arith.constant 0 : i32
    %c0_i32_1 = arith.constant 0 : i32
    return %c0_i32, %c0_i32_0 : i32, i32
  }
  func.func @transform_4(%arg0: i32) -> (i32, i32) {
    %c0_i32 = arith.constant 0 : i32
    %c0_i32_0 = arith.constant 0 : i32
    %c0_i32_1 = arith.constant 0 : i32
    return %c0_i32, %c0_i32_0 : i32, i32
  }
}

</mosaic_0001>

<llo_original>
// kernel: tpu_custom_call.1
$region0: #{tpu_custom_call.1}
  #allocation0 [shape = 'u32[]', space=smem, size = 0x4, offset = 0x4, fixed_abs, tag = 'smem constant byte address 0x4 - core index']
  #allocation1 [shape = 'u32[144,128]{1,0:T(1,128)}', space=vmem, size = 0x12000, scoped, tag = 'internal scratch']
  %s0 = inlined_call_operand.hbm [shape: f32[3], index: 0, kind: input, shape index: {}]
  %s1 = inlined_call_operand.hbm [shape: f32[8,32], index: 1, kind: input, shape index: {}]
  %s2 = inlined_call_operand.hbm [shape: f32[8,32], index: 2, kind: input, shape index: {}]
  %s3 = inlined_call_operand.hbm [shape: f32[8,32], index: 3, kind: input, shape index: {}]
  %s4 = inlined_call_operand.hbm [shape: f32[8,32], index: 4, kind: output, shape index: {}]
  %s5 = sld [smem:[#allocation0]]
  $region42: #{tpu_custom_call.1} parent=0
    _
  %s7 = ssub.s32 1, %s5
  %s8 = scalar_select 0, %s7, %s5
  $region1: #{tpu_custom_call.1} parent=0
    #allocation2 [shape = 'u8[512]{0}', space=smem, size = 0x200, scoped, tag = 'input window, operand 0, single buffered']
    #allocation3 [shape = 's32[1]{0}', space=sflag, size = 0x4, scoped, tag = 'scoped memory for tpu_custom_call.1']
    #allocation4 [shape = 's32[1]{0}', space=sflag, size = 0x4, scoped, tag = 'scoped memory for tpu_custom_call.1']
    #allocation5 [shape = 's32[1]{0}', space=sflag, size = 0x4, scoped, tag = 'scoped memory for tpu_custom_call.1']
    #allocation6 [shape = 'u8[4096]{0}', space=vmem, size = 0x1000, scoped, tag = 'input window, operand 1, single buffered']
    #allocation7 [shape = 'u8[4096]{0}', space=vmem, size = 0x1000, scoped, tag = 'input window, operand 2, single buffered']
    #allocation8 [shape = 's32[1]{0}', space=sflag, size = 0x4, scoped, tag = 'scoped memory for tpu_custom_call.1']
    #allocation9 [shape = 'u8[4096]{0}', space=vmem, size = 0x1000, scoped, tag = 'input window, operand 3, single buffered']
    #allocation10 [shape = 'u8[4096]{0}', space=vmem, size = 0x1000, scoped, tag = 'output window, operand 0, single buffered']
    %9 = vsyncpa [#allocation5], 0
    %10 = vsyncpa [#allocation3], 0
    %11 = vsyncpa [#allocation8], 0
    %12 = vsyncpa [#allocation4], 0
    // Predicated region
    $region2: #{tpu_custom_call.1} parent=1 // pred_check
      _
    $region3: #{tpu_custom_call.1} parent=1 // pred_check_branch
      %14 = sbr.rel (0) target = $region5
    $region4: #{tpu_custom_call.1} parent=1 // pred_region
      %s16 = ssub.s32 16, 16
      %17 = vsyncadd [#allocation5], %s16
      %20 = dma.hbm_to_smem %s0, 16, [#allocation2], [#allocation5]
    $region5: #{tpu_custom_call.1} parent=1 // pred_fallthru
      _
    // Predicated region
    $region6: #{tpu_custom_call.1} parent=1 // pred_check
      _
    $region7: #{tpu_custom_call.1} parent=1 // pred_check_branch
      %22 = sbr.rel (0) target = $region9
    $region8: #{tpu_custom_call.1} parent=1 // pred_region
      %s24 = ssub.s32 128, 128
      %25 = vsyncadd [#allocation3], %s24
      %s27 = sshll.u32 [#allocation6], 4
      %s28 = int_to_ptr.vmem [resolvable:$true] %s27
      %30 = dma.hbm_to_vmem [thread:$0]  %s1, 128, %s28, [#allocation3]
    $region9: #{tpu_custom_call.1} parent=1 // pred_fallthru
      _
    // Predicated region
    $region10: #{tpu_custom_call.1} parent=1 // pred_check
      _
    $region11: #{tpu_custom_call.1} parent=1 // pred_check_branch
      %32 = sbr.rel (0) target = $region13
    $region12: #{tpu_custom_call.1} parent=1 // pred_region
      %s34 = ssub.s32 128, 128
      %35 = vsyncadd [#allocation8], %s34
      %s37 = sshll.u32 [#allocation7], 4
      %s38 = int_to_ptr.vmem [resolvable:$true] %s37
      %40 = dma.hbm_to_vmem [thread:$0]  %s2, 128, %s38, [#allocation8]
    $region13: #{tpu_custom_call.1} parent=1 // pred_fallthru
      _
    // Predicated region
    $region14: #{tpu_custom_call.1} parent=1 // pred_check
      _
    $region15: #{tpu_custom_call.1} parent=1 // pred_check_branch
      %42 = sbr.rel (0) target = $region17
    $region16: #{tpu_custom_call.1} parent=1 // pred_region
      %s44 = ssub.s32 128, 128
      %45 = vsyncadd [#allocation8], %s44
      %s47 = sshll.u32 [#allocation9], 4
      %s48 = int_to_ptr.vmem [resolvable:$true] %s47
      %50 = dma.hbm_to_vmem [thread:$0]  %s3, 128, %s48, [#allocation8]
    $region17: #{tpu_custom_call.1} parent=1 // pred_fallthru
      _
    // Predicated region
    $region18: #{tpu_custom_call.1} parent=1 // pred_check
      _
    $region19: #{tpu_custom_call.1} parent=1 // pred_check_branch
      %52 = sbr.rel (0) target = $region21
    $region20: #{tpu_custom_call.1} parent=1 // pred_region
      %53 = dma.done [#allocation5], 16
    $region21: #{tpu_custom_call.1} parent=1 // pred_fallthru
      _
    // Predicated region
    $region22: #{tpu_custom_call.1} parent=1 // pred_check
      _
    $region23: #{tpu_custom_call.1} parent=1 // pred_check_branch
      %55 = sbr.rel (0) target = $region25
    $region24: #{tpu_custom_call.1} parent=1 // pred_region
      %56 = dma.done [#allocation3], 128
    $region25: #{tpu_custom_call.1} parent=1 // pred_fallthru
      _
    // Predicated region
    $region26: #{tpu_custom_call.1} parent=1 // pred_check
      _
    $region27: #{tpu_custom_call.1} parent=1 // pred_check_branch
      %58 = sbr.rel (0) target = $region29
    $region28: #{tpu_custom_call.1} parent=1 // pred_region
      %59 = dma.done [#allocation8], 128
    $region29: #{tpu_custom_call.1} parent=1 // pred_fallthru
      _
    // Predicated region
    $region30: #{tpu_custom_call.1} parent=1 // pred_check
      _
    $region31: #{tpu_custom_call.1} parent=1 // pred_check_branch
      %61 = sbr.rel (0) target = $region33
    $region32: #{tpu_custom_call.1} parent=1 // pred_region
      %62 = dma.done [#allocation8], 128
    $region33: #{tpu_custom_call.1} parent=1 // pred_fallthru
      _
    %63 = sfence
    %s64 = sld [smem:[#allocation2]]
    %v65 = vld [vmem:[#allocation6] sm:$0xff]
    %v66 = vstv %s64
    %v67 = vmul.f32 %v66, %v65
    %s68 = sld [smem:[#allocation2 + $0x1]]
    %v69 = vld [vmem:[#allocation7] sm:$0xff]
    %v70 = vstv %s68
    %v71 = vmul.f32 %v70, %v69
    %v72 = vadd.f32 %v67, %v71
    %s73 = sld [smem:[#allocation2 + $0x2]]
    %v74 = vld [vmem:[#allocation9] sm:$0xff]
    %v75 = vstv %s73
    %v76 = vmul.f32 %v75, %v74
    %v77 = vadd.f32 %v72, %v76
    %vm78 = vcmask 261120
    %79 = vst.msk [vmem:[#allocation10] sm:$0xff] %vm78, %v77
    // Predicated region
    $region34: #{tpu_custom_call.1} parent=1 // pred_check
      _
    $region35: #{tpu_custom_call.1} parent=1 // pred_check_branch
      %81 = sbr.rel (0) target = $region37
    $region36: #{tpu_custom_call.1} parent=1 // pred_region
      %s83 = ssub.s32 128, 128
      %84 = vsyncadd [#allocation4], %s83
      %s86 = sshll.u32 [#allocation10], 4
      %s87 = int_to_ptr.vmem [resolvable:$true] %s86
      %89 = dma.vmem_to_hbm [thread:$0]  %s87, 128, %s4, [#allocation4]
    $region37: #{tpu_custom_call.1} parent=1 // pred_fallthru
      _
    // Predicated region
    $region38: #{tpu_custom_call.1} parent=1 // pred_check
      _
    $region39: #{tpu_custom_call.1} parent=1 // pred_check_branch
      %91 = sbr.rel (0) target = $region41
    $region40: #{tpu_custom_call.1} parent=1 // pred_region
      %92 = dma.done [#allocation4], 128
    $region41: #{tpu_custom_call.1} parent=1 // pred_fallthru
      _
    %93 = vsyncpa [#allocation3], 1
    %94 = vsyncpa [#allocation8], 1
    %95 = vsyncpa [#allocation4], 1
    %96 = vsyncpa [#allocation5], 1

</llo_original>
